<compile_context>
chip_gen: v5e
topology: v5e:2x2
jax: 0.10.0
libtpu: 0.0.40
codegen_flags: <defaults>
</compile_context>

<pallas_src>
import functools

import jax
import jax.numpy as jnp
from jax.experimental import pallas as pl
from jax.experimental.pallas import tpu as pltpu


def _round_up(x, m):
    return ((x + m - 1) // m) * m


def forwardmodel_kernel(a_ref, s_ref, wa_ref, ba_ref, ws_ref, bs_ref,
                        w1_ref, b1_ref, w2_ref, b2_ref, out_ref):
    # In-kernel bf16 cast of the streamed f32 activations (no wrapper HBM pass).
    a = a_ref[...].astype(jnp.bfloat16)
    s = s_ref[...].astype(jnp.bfloat16)

    # Layer 1: the two branch Linears + ReLU (f32 accumulate on the MXU).
    h_a = jnp.maximum(
        jnp.dot(a, wa_ref[...], preferred_element_type=jnp.float32) + ba_ref[...], 0.0)
    h_s = jnp.maximum(
        jnp.dot(s, ws_ref[...], preferred_element_type=jnp.float32) + bs_ref[...], 0.0)

    # torch.cat((action_fc, state_fc), 1): 128-aligned lane concat (cheap XLU retile).
    h = jnp.concatenate([h_a.astype(jnp.bfloat16), h_s.astype(jnp.bfloat16)], axis=-1)

    # Layer 2: 256 -> 256, ReLU (single K=256 MXU matmul).
    h1 = jnp.maximum(
        jnp.dot(h, w1_ref[...], preferred_element_type=jnp.float32) + b1_ref[...], 0.0)

    # Layer 3: 256 -> state_dim; write only the real columns (minimal HBM writeback).
    out = jnp.dot(h1.astype(jnp.bfloat16), w2_ref[...],
                  preferred_element_type=jnp.float32)
    out_ref[...] = out + b2_ref[...]


@functools.partial(jax.jit, static_argnames=("tile_m", "min_rows_for_split"))
def forwardmodel_forward(state, action, params, *, tile_m=2048, min_rows_for_split=1024):
    """state: [B, state_dim] f32, action: [B, action_dim] f32 -> [B, state_dim] f32."""
    B, state_dim = state.shape
    _, action_dim = action.shape
    hid1 = params["Wa"].shape[1]     # 128
    hid2 = params["W1"].shape[0]     # 256

    # ---- batch tiling: divisor-aware, no padded copies -----------------------------
    # Keep >= 2 grid steps for big batches so v7x's two TensorCores both get work.
    want_split = B >= min_rows_for_split
    steps = max(pl.cdiv(B, tile_m), 2 if want_split else 1)
    if steps == 1:
        tm = B                                   # one block == full batch (always legal)
    else:
        tm = _round_up(pl.cdiv(B, steps), 8)     # sublane-aligned tile
        steps = pl.cdiv(B, tm)                   # partial trailing block handled by grid

    # ---- cost hint for XLA's scheduler ----------------------------------------------
    w_bytes = sum(int(v.size) * v.dtype.itemsize for v in params.values())
    cost = pl.CostEstimate(
        flops=2 * B * (action_dim * hid1 + state_dim * hid1
                       + hid2 * hid2 + hid2 * state_dim),
        transcendentals=0,
        bytes_accessed=B * (action_dim + 2 * state_dim) * 4 + w_bytes,
    )

    out = pl.pallas_call(
        forwardmodel_kernel,
        out_shape=jax.ShapeDtypeStruct((B, state_dim), jnp.float32),
        grid=(steps,),
        in_specs=[
            # streamed f32 activations
            pl.BlockSpec((tm, action_dim), lambda i: (i, 0)),
            pl.BlockSpec((tm, state_dim), lambda i: (i, 0)),
            # VMEM-resident weights / biases (constant block index -> loaded once)
            pl.BlockSpec((action_dim, hid1), lambda i: (0, 0)),
            pl.BlockSpec((1, hid1), lambda i: (0, 0)),
            pl.BlockSpec((state_dim, hid1), lambda i: (0, 0)),
            pl.BlockSpec((1, hid1), lambda i: (0, 0)),
            pl.BlockSpec((hid2, hid2), lambda i: (0, 0)),
            pl.BlockSpec((1, hid2), lambda i: (0, 0)),
            pl.BlockSpec((hid2, state_dim), lambda i: (0, 0)),
            pl.BlockSpec((1, state_dim), lambda i: (0, 0)),
        ],
        out_specs=pl.BlockSpec((tm, state_dim), lambda i: (i, 0)),
        compiler_params=pltpu.CompilerParams(dimension_semantics=("parallel",)),
        cost_estimate=cost,
    )(action, state,
      params["Wa"], params["ba"], params["Ws"], params["bs"],
      params["W1"], params["b1"], params["W2"], params["b2"])

    return out


def init_params(key, state_dim, action_dim, hidden=128):
    """Synthetic nn.Linear-style init. Returns (raw f32 params, packed kernel params)."""
    ks = jax.random.split(key, 8)

    def uni(k, shape, fan_in):
        bound = 1.0 / jnp.sqrt(jnp.float32(fan_in))
        return jax.random.uniform(k, shape, jnp.float32, -bound, bound)

    Wa = uni(ks[0], (action_dim, hidden), action_dim)       # action_fc
    ba = uni(ks[1], (1, hidden), action_dim)
    Ws = uni(ks[2], (state_dim, hidden), state_dim)          # state_fc
    bs = uni(ks[3], (1, hidden), state_dim)
    W1 = uni(ks[4], (2 * hidden, 2 * hidden), 2 * hidden)    # fc Linear(256, 256)
    b1 = uni(ks[5], (1, 2 * hidden), 2 * hidden)
    W2 = uni(ks[6], (2 * hidden, state_dim), 2 * hidden)     # fc Linear(256, state_dim)
    b2 = uni(ks[7], (1, state_dim), 2 * hidden)

    raw = dict(Wa=Wa, ba=ba, Ws=Ws, bs=bs, W1=W1, b1=b1, W2=W2, b2=b2)
    packed = dict(
        Wa=Wa.astype(jnp.bfloat16), ba=ba,
        Ws=Ws.astype(jnp.bfloat16), bs=bs,
        W1=W1.astype(jnp.bfloat16), b1=b1,
        W2=W2.astype(jnp.bfloat16), b2=b2,
    )
    return raw, packed


def reference_forward_f32(state, action, raw):
    """Exact PyTorch-module semantics in f32."""
    h_a = jnp.maximum(action @ raw["Wa"] + raw["ba"], 0.0)
    h_s = jnp.maximum(state @ raw["Ws"] + raw["bs"], 0.0)
    h = jnp.concatenate([h_a, h_s], axis=1)
    h1 = jnp.maximum(h @ raw["W1"] + raw["b1"], 0.0)
    return h1 @ raw["W2"] + raw["b2"]


def reference_forward_bf16(state, action, packed):
    """Same op sequence / dtypes as the kernel, in plain JAX (tight check)."""
    a = action.astype(jnp.bfloat16)
    s = state.astype(jnp.bfloat16)
    h_a = jnp.maximum(
        jnp.dot(a, packed["Wa"], preferred_element_type=jnp.float32) + packed["ba"], 0.0)
    h_s = jnp.maximum(
        jnp.dot(s, packed["Ws"], preferred_element_type=jnp.float32) + packed["bs"], 0.0)
    h = jnp.concatenate([h_a.astype(jnp.bfloat16), h_s.astype(jnp.bfloat16)], axis=-1)
    h1 = jnp.maximum(
        jnp.dot(h, packed["W1"], preferred_element_type=jnp.float32) + packed["b1"], 0.0)
    return jnp.dot(h1.astype(jnp.bfloat16), packed["W2"],
                   preferred_element_type=jnp.float32) + packed["b2"]


if __name__ == "__main__":
    key = jax.random.PRNGKey(0)
    k_state, k_action, k_params, k_b = jax.random.split(key, 4)

    batch = 8
    state_dim = 16
    action_dim = 8

    state = jax.random.normal(k_state, (batch, state_dim), jnp.float32)
    action = jax.random.normal(k_action, (batch, action_dim), jnp.float32)
    raw, packed = init_params(k_params, state_dim, action_dim)

    out = jax.block_until_ready(forwardmodel_forward(state, action, packed))
    assert out.shape == (batch, state_dim)

    # Tight check against a pure-JAX replica of the kernel's bf16 math.
    ref_bf16 = reference_forward_bf16(state, action, packed)
    assert jnp.allclose(out, ref_bf16, atol=2e-3, rtol=2e-3), \
        f"max|diff| vs bf16 ref = {jnp.max(jnp.abs(out - ref_bf16))}"

    # Sanity check against the full-precision PyTorch-equivalent forward
    # (bf16 weights introduce ~1e-2-level differences).
    ref_f32 = reference_forward_f32(state, action, raw)
    assert jnp.allclose(out, ref_f32, atol=2e-1, rtol=2e-1), \
        f"max|diff| vs f32 ref = {jnp.max(jnp.abs(out - ref_f32))}"

    # Exercise the multi-step grid + ragged (partial) trailing block path.
    b2 = 13
    state_b = jax.random.normal(k_b, (b2, state_dim), jnp.float32)
    action_b = jax.random.normal(jax.random.fold_in(k_b, 1), (b2, action_dim), jnp.float32)
    out_b = jax.block_until_ready(
        forwardmodel_forward(state_b, action_b, packed, tile_m=8, min_rows_for_split=8))
    ref_b = reference_forward_bf16(state_b, action_b, packed)
    assert out_b.shape == (b2, state_dim)
    assert jnp.allclose(out_b, ref_b, atol=2e-3, rtol=2e-3), \
        f"ragged-tail max|diff| = {jnp.max(jnp.abs(out_b - ref_b))}"

    print("KERNEL_OK")
</pallas_src>

<mosaic_0001>
module attributes {stable_mosaic.version = 11 : i64} {
  func.func @forwardmodel_kernel(%arg0: i32, %arg1: memref<8x8xf32, #tpu.memory_space<vmem>>, %arg2: memref<8x16xf32, #tpu.memory_space<vmem>>, %arg3: memref<8x128xbf16, #tpu.memory_space<vmem>>, %arg4: memref<1x128xf32, #tpu.memory_space<vmem>>, %arg5: memref<16x128xbf16, #tpu.memory_space<vmem>>, %arg6: memref<1x128xf32, #tpu.memory_space<vmem>>, %arg7: memref<256x256xbf16, #tpu.memory_space<vmem>>, %arg8: memref<1x256xf32, #tpu.memory_space<vmem>>, %arg9: memref<256x16xbf16, #tpu.memory_space<vmem>>, %arg10: memref<1x16xf32, #tpu.memory_space<vmem>>, %arg11: memref<8x16xf32, #tpu.memory_space<vmem>>) attributes {dimension_semantics = [#tpu.dimension_semantics<parallel>], iteration_bounds = array<i64: 1>, scalar_prefetch = 0 : i64, scratch_operands = 0 : i64, tpu.core_type = #tpu.core_type<tc>, window_params = [{transform_indices = @transform_0, window_bounds = array<i64: 8, 8>}, {transform_indices = @transform_1, window_bounds = array<i64: 8, 16>}, {pipeline_mode = #tpu.pipeline_mode<synchronous>, transform_indices = @transform_2, window_bounds = array<i64: 8, 128>}, {pipeline_mode = #tpu.pipeline_mode<synchronous>, transform_indices = @transform_3, window_bounds = array<i64: 1, 128>}, {pipeline_mode = #tpu.pipeline_mode<synchronous>, transform_indices = @transform_4, window_bounds = array<i64: 16, 128>}, {pipeline_mode = #tpu.pipeline_mode<synchronous>, transform_indices = @transform_5, window_bounds = array<i64: 1, 128>}, {pipeline_mode = #tpu.pipeline_mode<synchronous>, transform_indices = @transform_6, window_bounds = array<i64: 256, 256>}, {pipeline_mode = #tpu.pipeline_mode<synchronous>, transform_indices = @transform_7, window_bounds = array<i64: 1, 256>}, {pipeline_mode = #tpu.pipeline_mode<synchronous>, transform_indices = @transform_8, window_bounds = array<i64: 256, 16>}, {pipeline_mode = #tpu.pipeline_mode<synchronous>, transform_indices = @transform_9, window_bounds = array<i64: 1, 16>}, {transform_indices = @transform_10, window_bounds = array<i64: 8, 16>}]} {
    %c0 = arith.constant 0 : index
    %c0_0 = arith.constant 0 : index
    %0 = vector.load %arg1[%c0, %c0_0] : memref<8x8xf32, #tpu.memory_space<vmem>>, vector<8x8xf32>
    %1 = arith.truncf %0 : vector<8x8xf32> to vector<8x8xbf16>
    %c0_1 = arith.constant 0 : index
    %c0_2 = arith.constant 0 : index
    %2 = vector.load %arg2[%c0_1, %c0_2] : memref<8x16xf32, #tpu.memory_space<vmem>>, vector<8x16xf32>
    %3 = arith.truncf %2 : vector<8x16xf32> to vector<8x16xbf16>
    %c0_3 = arith.constant 0 : index
    %c0_4 = arith.constant 0 : index
    %4 = vector.load %arg3[%c0_3, %c0_4] : memref<8x128xbf16, #tpu.memory_space<vmem>>, vector<8x128xbf16>
    %cst = arith.constant dense<0.000000e+00> : vector<8x128xf32>
    %5 = tpu.matmul %1, %4, %cst {dimension_numbers = #tpu.dot_dimension_numbers<[1], [0], [0], [1], [0, 0, 1, 1], [], []>} : vector<8x8xbf16>, vector<8x128xbf16>, vector<8x128xf32> -> vector<8x128xf32>
    %c0_5 = arith.constant 0 : index
    %c0_6 = arith.constant 0 : index
    %6 = vector.load %arg4[%c0_5, %c0_6] : memref<1x128xf32, #tpu.memory_space<vmem>>, vector<1x128xf32>
    %7 = vector.broadcast %6 : vector<1x128xf32> to vector<8x128xf32>
    %8 = arith.addf %5, %7 : vector<8x128xf32>
    %cst_7 = arith.constant 0.000000e+00 : f32
    %9 = vector.broadcast %cst_7 : f32 to vector<8x128xf32>
    %10 = arith.maximumf %8, %9 : vector<8x128xf32>
    %c0_8 = arith.constant 0 : index
    %c0_9 = arith.constant 0 : index
    %11 = vector.load %arg5[%c0_8, %c0_9] : memref<16x128xbf16, #tpu.memory_space<vmem>>, vector<16x128xbf16>
    %cst_10 = arith.constant dense<0.000000e+00> : vector<8x128xf32>
    %12 = tpu.matmul %3, %11, %cst_10 {dimension_numbers = #tpu.dot_dimension_numbers<[1], [0], [0], [1], [0, 0, 1, 1], [], []>} : vector<8x16xbf16>, vector<16x128xbf16>, vector<8x128xf32> -> vector<8x128xf32>
    %c0_11 = arith.constant 0 : index
    %c0_12 = arith.constant 0 : index
    %13 = vector.load %arg6[%c0_11, %c0_12] : memref<1x128xf32, #tpu.memory_space<vmem>>, vector<1x128xf32>
    %14 = vector.broadcast %13 : vector<1x128xf32> to vector<8x128xf32>
    %15 = arith.addf %12, %14 : vector<8x128xf32>
    %cst_13 = arith.constant 0.000000e+00 : f32
    %16 = vector.broadcast %cst_13 : f32 to vector<8x128xf32>
    %17 = arith.maximumf %15, %16 : vector<8x128xf32>
    %18 = arith.truncf %10 : vector<8x128xf32> to vector<8x128xbf16>
    %19 = arith.truncf %17 : vector<8x128xf32> to vector<8x128xbf16>
    %20 = tpu.concatenate %18, %19 in 1 : vector<8x128xbf16>, vector<8x128xbf16> -> vector<8x256xbf16>
    %c0_14 = arith.constant 0 : index
    %c0_15 = arith.constant 0 : index
    %21 = vector.load %arg7[%c0_14, %c0_15] : memref<256x256xbf16, #tpu.memory_space<vmem>>, vector<256x256xbf16>
    %cst_16 = arith.constant dense<0.000000e+00> : vector<8x256xf32>
    %22 = tpu.matmul %20, %21, %cst_16 {dimension_numbers = #tpu.dot_dimension_numbers<[1], [0], [0], [1], [0, 0, 1, 1], [], []>} : vector<8x256xbf16>, vector<256x256xbf16>, vector<8x256xf32> -> vector<8x256xf32>
    %c0_17 = arith.constant 0 : index
    %c0_18 = arith.constant 0 : index
    %23 = vector.load %arg8[%c0_17, %c0_18] : memref<1x256xf32, #tpu.memory_space<vmem>>, vector<1x256xf32>
    %24 = vector.broadcast %23 : vector<1x256xf32> to vector<8x256xf32>
    %25 = arith.addf %22, %24 : vector<8x256xf32>
    %cst_19 = arith.constant 0.000000e+00 : f32
    %26 = vector.broadcast %cst_19 : f32 to vector<8x256xf32>
    %27 = arith.maximumf %25, %26 : vector<8x256xf32>
    %28 = arith.truncf %27 : vector<8x256xf32> to vector<8x256xbf16>
    %c0_20 = arith.constant 0 : index
    %c0_21 = arith.constant 0 : index
    %29 = vector.load %arg9[%c0_20, %c0_21] : memref<256x16xbf16, #tpu.memory_space<vmem>>, vector<256x16xbf16>
    %cst_22 = arith.constant dense<0.000000e+00> : vector<8x16xf32>
    %30 = tpu.matmul %28, %29, %cst_22 {dimension_numbers = #tpu.dot_dimension_numbers<[1], [0], [0], [1], [0, 0, 1, 1], [], []>} : vector<8x256xbf16>, vector<256x16xbf16>, vector<8x16xf32> -> vector<8x16xf32>
    %c0_23 = arith.constant 0 : index
    %c0_24 = arith.constant 0 : index
    %31 = vector.load %arg10[%c0_23, %c0_24] : memref<1x16xf32, #tpu.memory_space<vmem>>, vector<1x16xf32>
    %32 = vector.broadcast %31 : vector<1x16xf32> to vector<8x16xf32>
    %33 = arith.addf %30, %32 : vector<8x16xf32>
    %c0_25 = arith.constant 0 : index
    %c0_26 = arith.constant 0 : index
    %34 = vector.load %arg11[%c0_25, %c0_26] : memref<8x16xf32, #tpu.memory_space<vmem>>, vector<8x16xf32>
    tpu.vector_store %arg11[%c0_25, %c0_26], %33 {strides = array<i32>} : memref<8x16xf32, #tpu.memory_space<vmem>>, vector<8x16xf32>,
    return
  }
  func.func @transform_0(%arg0: i32) -> (i32, i32) {
    %c0_i32 = arith.constant 0 : i32
    %c0_i32_0 = arith.constant 0 : i32
    return %arg0, %c0_i32 : i32, i32
  }
  func.func @transform_1(%arg0: i32) -> (i32, i32) {
    %c0_i32 = arith.constant 0 : i32
    %c0_i32_0 = arith.constant 0 : i32
    return %arg0, %c0_i32 : i32, i32
  }
  func.func @transform_2(%arg0: i32) -> (i32, i32) {
    %c0_i32 = arith.constant 0 : i32
    %c0_i32_0 = arith.constant 0 : i32
    %c0_i32_1 = arith.constant 0 : i32
    return %c0_i32, %c0_i32_0 : i32, i32
  }
  func.func @transform_3(%arg0: i32) -> (i32, i32) {
    %c0_i32 = arith.constant 0 : i32
    %c0_i32_0 = arith.constant 0 : i32
    %c0_i32_1 = arith.constant 0 : i32
    return %c0_i32, %c0_i32_0 : i32, i32
  }
  func.func @transform_4(%arg0: i32) -> (i32, i32) {
    %c0_i32 = arith.constant 0 : i32
    %c0_i32_0 = arith.constant 0 : i32
    %c0_i32_1 = arith.constant 0 : i32
    return %c0_i32, %c0_i32_0 : i32, i32
  }
  func.func @transform_5(%arg0: i32) -> (i32, i32) {
    %c0_i32 = arith.constant 0 : i32
    %c0_i32_0 = arith.constant 0 : i32
    %c0_i32_1 = arith.constant 0 : i32
    return %c0_i32, %c0_i32_0 : i32, i32
  }
  func.func @transform_6(%arg0: i32) -> (i32, i32) {
    %c0_i32 = arith.constant 0 : i32
    %c0_i32_0 = arith.constant 0 : i32
    %c0_i32_1 = arith.constant 0 : i32
    return %c0_i32, %c0_i32_0 : i32, i32
  }
  func.func @transform_7(%arg0: i32) -> (i32, i32) {
    %c0_i32 = arith.constant 0 : i32
    %c0_i32_0 = arith.constant 0 : i32
    %c0_i32_1 = arith.constant 0 : i32
    return %c0_i32, %c0_i32_0 : i32, i32
  }
  func.func @transform_8(%arg0: i32) -> (i32, i32) {
    %c0_i32 = arith.constant 0 : i32
    %c0_i32_0 = arith.constant 0 : i32
    %c0_i32_1 = arith.constant 0 : i32
    return %c0_i32, %c0_i32_0 : i32, i32
  }
  func.func @transform_9(%arg0: i32) -> (i32, i32) {
    %c0_i32 = arith.constant 0 : i32
    %c0_i32_0 = arith.constant 0 : i32
    %c0_i32_1 = arith.constant 0 : i32
    return %c0_i32, %c0_i32_0 : i32, i32
  }
  func.func @transform_10(%arg0: i32) -> (i32, i32) {
    %c0_i32 = arith.constant 0 : i32
    %c0_i32_0 = arith.constant 0 : i32
    return %arg0, %c0_i32 : i32, i32
  }
}

</mosaic_0001>

<llo_original>
// kernel: forwardmodel_forward.1
$region0: #{forwardmodel_forward.1}
  #allocation0 [shape = 'u32[]', space=smem, size = 0x4, offset = 0x4, fixed_abs, tag = 'smem constant byte address 0x4 - core index']
  #allocation1 [shape = 'u32[72,128]{1,0:T(1,128)}', space=vmem, size = 0x9000, scoped, tag = 'internal scratch']
  %s0 = inlined_call_operand.vmem [shape: f32[8,8], index: 0, kind: input, shape index: {}]
  %s1 = inlined_call_operand.vmem [shape: f32[8,16], index: 1, kind: input, shape index: {}]
  %s2 = inlined_call_operand.vmem [shape: bf16[8,128], index: 2, kind: input, shape index: {}]
  %s3 = inlined_call_operand.vmem [shape: f32[1,128], index: 3, kind: input, shape index: {}]
  %s4 = inlined_call_operand.vmem [shape: bf16[16,128], index: 4, kind: input, shape index: {}]
  %s5 = inlined_call_operand.vmem [shape: f32[1,128], index: 5, kind: input, shape index: {}]
  %s6 = inlined_call_operand.hbm [shape: bf16[256,256], index: 6, kind: input, shape index: {}]
  %s7 = inlined_call_operand.vmem [shape: f32[1,256], index: 7, kind: input, shape index: {}]
  %s8 = inlined_call_operand.vmem [shape: bf16[256,16], index: 8, kind: input, shape index: {}]
  %s9 = inlined_call_operand.vmem [shape: f32[1,16], index: 9, kind: input, shape index: {}]
  %s10 = inlined_call_operand.hbm [shape: f32[8,16], index: 10, kind: output, shape index: {}]
  %s11 = sld [smem:[#allocation0]]
  $region54: #{forwardmodel_forward.1} parent=0
    _
  %s13 = ssub.s32 1, %s11
  %s14 = scalar_select 0, %s13, %s11
  $region1: #{forwardmodel_forward.1} parent=0
    #allocation2 [shape = 'u8[131072]{0}', space=vmem, size = 0x20000, scoped, tag = 'input window, operand 6, single buffered']
    #allocation3 [shape = 's32[1]{0}', space=sflag, size = 0x4, scoped, tag = 'scoped memory for forwardmodel_forward.1']
    #allocation4 [shape = 's32[1]{0}', space=sflag, size = 0x4, scoped, tag = 'scoped memory for forwardmodel_forward.1']
    #allocation5 [shape = 'u8[4096]{0}', space=vmem, size = 0x1000, scoped, tag = 'output window, operand 0, single buffered']
    %15 = vsyncpa [#allocation3], 0
    %16 = vsyncpa [#allocation4], 0
    // Predicated region
    $region2: #{forwardmodel_forward.1} parent=1 // pred_check
      _
    $region3: #{forwardmodel_forward.1} parent=1 // pred_check_branch
      %18 = sbr.rel (0) target = $region5
    $region4: #{forwardmodel_forward.1} parent=1 // pred_region
      _
    $region5: #{forwardmodel_forward.1} parent=1 // pred_fallthru
      _
    // Predicated region
    $region6: #{forwardmodel_forward.1} parent=1 // pred_check
      _
    $region7: #{forwardmodel_forward.1} parent=1 // pred_check_branch
      %20 = sbr.rel (0) target = $region9
    $region8: #{forwardmodel_forward.1} parent=1 // pred_region
      _
    $region9: #{forwardmodel_forward.1} parent=1 // pred_fallthru
      _
    // Predicated region
    $region10: #{forwardmodel_forward.1} parent=1 // pred_check
      _
    $region11: #{forwardmodel_forward.1} parent=1 // pred_check_branch
      %22 = sbr.rel (0) target = $region13
    $region12: #{forwardmodel_forward.1} parent=1 // pred_region
      _
    $region13: #{forwardmodel_forward.1} parent=1 // pred_fallthru
      _
    // Predicated region
    $region14: #{forwardmodel_forward.1} parent=1 // pred_check
      _
    $region15: #{forwardmodel_forward.1} parent=1 // pred_check_branch
      %24 = sbr.rel (0) target = $region17
    $region16: #{forwardmodel_forward.1} parent=1 // pred_region
      _
    $region17: #{forwardmodel_forward.1} parent=1 // pred_fallthru
      _
    // Predicated region
    $region18: #{forwardmodel_forward.1} parent=1 // pred_check
      _
    $region19: #{forwardmodel_forward.1} parent=1 // pred_check_branch
      %26 = sbr.rel (0) target = $region21
    $region20: #{forwardmodel_forward.1} parent=1 // pred_region
      _
    $region21: #{forwardmodel_forward.1} parent=1 // pred_fallthru
      _
    // Predicated region
    $region22: #{forwardmodel_forward.1} parent=1 // pred_check
      _
    $region23: #{forwardmodel_forward.1} parent=1 // pred_check_branch
      %28 = sbr.rel (0) target = $region25
    $region24: #{forwardmodel_forward.1} parent=1 // pred_region
      _
    $region25: #{forwardmodel_forward.1} parent=1 // pred_fallthru
      _
    // Predicated region
    $region26: #{forwardmodel_forward.1} parent=1 // pred_check
      _
    $region27: #{forwardmodel_forward.1} parent=1 // pred_check_branch
      %30 = sbr.rel (0) target = $region29
    $region28: #{forwardmodel_forward.1} parent=1 // pred_region
      %32 = vsyncadd [#allocation3], 0
      %s33 = sshll.u32 %s6, 4
      %s34 = int_to_ptr.hbm [resolvable:$true] %s33
      %s35 = sshll.u32 [#allocation2], 4
      %s36 = int_to_ptr.vmem [resolvable:$true] %s35
      %41 = dma.hbm_to_vmem [thread:$0]  %s34, 4096, %s36, [#allocation3], 128, 128, 8
    $region29: #{forwardmodel_forward.1} parent=1 // pred_fallthru
      _
    // Predicated region
    $region30: #{forwardmodel_forward.1} parent=1 // pred_check
      _
    $region31: #{forwardmodel_forward.1} parent=1 // pred_check_branch
      %43 = sbr.rel (0) target = $region33
    $region32: #{forwardmodel_forward.1} parent=1 // pred_region
      _
    $region33: #{forwardmodel_forward.1} parent=1 // pred_fallthru
      _
    // Predicated region
    $region34: #{forwardmodel_forward.1} parent=1 // pred_check
      _
    $region35: #{forwardmodel_forward.1} parent=1 // pred_check_branch
      %45 = sbr.rel (0) target = $region37
    $region36: #{forwardmodel_forward.1} parent=1 // pred_region
      _
    $region37: #{forwardmodel_forward.1} parent=1 // pred_fallthru
      _
    // Predicated region
    $region38: #{forwardmodel_forward.1} parent=1 // pred_check
      _
    $region39: #{forwardmodel_forward.1} parent=1 // pred_check_branch
      %47 = sbr.rel (0) target = $region41
    $region40: #{forwardmodel_forward.1} parent=1 // pred_region
      _
    $region41: #{forwardmodel_forward.1} parent=1 // pred_fallthru
      _
    // Predicated region
    $region42: #{forwardmodel_forward.1} parent=1 // pred_check
      _
    $region43: #{forwardmodel_forward.1} parent=1 // pred_check_branch
      %49 = sbr.rel (0) target = $region45
    $region44: #{forwardmodel_forward.1} parent=1 // pred_region
      %51 = dma.done [#allocation3], 4096
    $region45: #{forwardmodel_forward.1} parent=1 // pred_fallthru
      _
    %v53 = vld [vmem:[%s0] sm:$0xff]
    %v54 = vpack.c.bf16 %v53, %v53
    %v55 = vld [vmem:[%s1] sm:$0xff]
    %v56 = vpack.c.bf16 %v55, %v55
    %v57 = vld [vmem:[%s2] sm:$0xf]
    %v58 = vld [vmem:[%s3] sm:$0x1]
    %v60 = vperm.slane %v58, 0
    %vm62 = vcmask 64512
    %v64 = vsel %vm62, %v54, 0
    %vm66 = vcmask 1043456
    %v68 = vsel %vm66, %v57, 0
    %70 = vmatpush.bf16.msra.mxu0 0
    %71 = vmatpush.bf16.msra.mxu0 0
    %72 = vmatpush.bf16.msra.mxu0 0
    %73 = vmatpush.bf16.msra.mxu0 0
    %74 = vmatpush.bf16.msra.mxu0 0
    %75 = vmatpush.bf16.msra.mxu0 0
    %76 = vmatpush.bf16.msra.mxu0 0
    %77 = vmatpush.bf16.msra.mxu0 %v68
    %78 = vmatmul.bf16.gmra.mxu0 %v64
    %v79 = vpop.f32.mrf.mxu0
    %v80 = vadd.f32 %v60, %v79
    %v81 = vpop.f32.mrf.mxu0
    %82 = vdwg.mxu0
    %v83 = vmax.f32 %v80, 0.0
    %v84 = vld [vmem:[%s4] sm:$0xf]
    %v85 = vld [vmem:[%s4 + $0x4] sm:$0xf]
    %v86 = vld [vmem:[%s5] sm:$0x1]
    %v88 = vperm.slane %v86, 0
    %v92 = vunpack.c.l.b16 %v84
    %v93 = vunpack.c.l.b16 %v85
    %v94 = vpack.c.b16 %v93, %v92
    %vm96 = vcmask 130048
    %v98 = vsel %vm96, %v56, 0
    %100 = vmatpush.bf16.msra.mxu0 0
    %101 = vmatpush.bf16.msra.mxu0 0
    %102 = vmatpush.bf16.msra.mxu0 0
    %103 = vmatpush.bf16.msra.mxu0 0
    %104 = vmatpush.bf16.msra.mxu0 0
    %105 = vmatpush.bf16.msra.mxu0 0
    %106 = vmatpush.bf16.msra.mxu0 0
    %107 = vmatpush.bf16.msra.mxu0 %v94
    %108 = vmatmul.bf16.gmra.mxu0 %v98
    %v109 = vpop.f32.mrf.mxu0
    %v110 = vadd.f32 %v88, %v109
    %v111 = vpop.f32.mrf.mxu0
    %112 = vdwg.mxu0
    %v113 = vmax.f32 %v110, 0.0
    %v114 = vpack.c.bf16 %v83, %v83
    %v115 = vpack.c.bf16 %v113, %v113
    %v116 = vld [vmem:[#allocation2] sm:$0xff]
    %v117 = vld [vmem:[#allocation2 + $0x8] sm:$0xff]
    %v118 = vld [vmem:[#allocation2 + $0x10] sm:$0xff]
    %v119 = vld [vmem:[#allocation2 + $0x18] sm:$0xff]
    %v120 = vld [vmem:[#allocation2 + $0x20] sm:$0xff]
    %v121 = vld [vmem:[#allocation2 + $0x28] sm:$0xff]
    %v122 = vld [vmem:[#allocation2 + $0x30] sm:$0xff]
    %v123 = vld [vmem:[#allocation2 + $0x38] sm:$0xff]
    %v124 = vld [vmem:[#allocation2 + $0x40] sm:$0xff]
    %v125 = vld [vmem:[#allocation2 + $0x48] sm:$0xff]
    %v126 = vld [vmem:[#allocation2 + $0x50] sm:$0xff]
    %v127 = vld [vmem:[#allocation2 + $0x58] sm:$0xff]
    %v128 = vld [vmem:[#allocation2 + $0x60] sm:$0xff]
    %v129 = vld [vmem:[#allocation2 + $0x68] sm:$0xff]
    %v130 = vld [vmem:[#allocation2 + $0x70] sm:$0xff]
    %v131 = vld [vmem:[#allocation2 + $0x78] sm:$0xff]
    %v132 = vld [vmem:[#allocation2 + $0x80] sm:$0xff]
    %v133 = vld [vmem:[#allocation2 + $0x88] sm:$0xff]
    %v134 = vld [vmem:[#allocation2 + $0x90] sm:$0xff]
    %v135 = vld [vmem:[#allocation2 + $0x98] sm:$0xff]
    %v136 = vld [vmem:[#allocation2 + $0xa0] sm:$0xff]
    %v137 = vld [vmem:[#allocation2 + $0xa8] sm:$0xff]
    %v138 = vld [vmem:[#allocation2 + $0xb0] sm:$0xff]
    %v139 = vld [vmem:[#allocation2 + $0xb8] sm:$0xff]
    %v140 = vld [vmem:[#allocation2 + $0xc0] sm:$0xff]
    %v141 = vld [vmem:[#allocation2 + $0xc8] sm:$0xff]
    %v142 = vld [vmem:[#allocation2 + $0xd0] sm:$0xff]
    %v143 = vld [vmem:[#allocation2 + $0xd8] sm:$0xff]
    %v144 = vld [vmem:[#allocation2 + $0xe0] sm:$0xff]
    %v145 = vld [vmem:[#allocation2 + $0xe8] sm:$0xff]
    %v146 = vld [vmem:[#allocation2 + $0xf0] sm:$0xff]
    %v147 = vld [vmem:[#allocation2 + $0xf8] sm:$0xff]
    %v148 = vld [vmem:[%s7] sm:$0x3]
    %v150 = vperm.slane %v148, 0
    %v151 = vperm.slane %v148, 1
    %v186 = vunpack.c.l.b16 %v116
    %v187 = vunpack.c.h.b16 %v116
    %v188 = vunpack.c.l.b16 %v117
    %v189 = vunpack.c.h.b16 %v117
    %v190 = vunpack.c.l.b16 %v118
    %v191 = vunpack.c.h.b16 %v118
    %v192 = vunpack.c.l.b16 %v119
    %v193 = vunpack.c.h.b16 %v119
    %v194 = vunpack.c.l.b16 %v120
    %v195 = vunpack.c.h.b16 %v120
    %v196 = vunpack.c.l.b16 %v121
    %v197 = vunpack.c.h.b16 %v121
    %v198 = vunpack.c.l.b16 %v122
    %v199 = vunpack.c.h.b16 %v122
    %v200 = vunpack.c.l.b16 %v123
    %v201 = vunpack.c.h.b16 %v123
    %v202 = vunpack.c.l.b16 %v124
    %v203 = vunpack.c.h.b16 %v124
    %v204 = vunpack.c.l.b16 %v125
    %v205 = vunpack.c.h.b16 %v125
    %v206 = vunpack.c.l.b16 %v126
    %v207 = vunpack.c.h.b16 %v126
    %v208 = vunpack.c.l.b16 %v127
    %v209 = vunpack.c.h.b16 %v127
    %v210 = vunpack.c.l.b16 %v128
    %v211 = vunpack.c.h.b16 %v128
    %v212 = vunpack.c.l.b16 %v129
    %v213 = vunpack.c.h.b16 %v129
    %v214 = vunpack.c.l.b16 %v130
    %v215 = vunpack.c.h.b16 %v130
    %v216 = vunpack.c.l.b16 %v131
    %v217 = vunpack.c.h.b16 %v131
    %v218 = vunpack.c.l.b16 %v132
    %v219 = vunpack.c.h.b16 %v132
    %v220 = vunpack.c.l.b16 %v133
    %v221 = vunpack.c.h.b16 %v133
    %v222 = vunpack.c.l.b16 %v134
    %v223 = vunpack.c.h.b16 %v134
    %v224 = vunpack.c.l.b16 %v135
    %v225 = vunpack.c.h.b16 %v135
    %v226 = vunpack.c.l.b16 %v136
    %v227 = vunpack.c.h.b16 %v136
    %v228 = vunpack.c.l.b16 %v137
    %v229 = vunpack.c.h.b16 %v137
    %v230 = vunpack.c.l.b16 %v138
    %v231 = vunpack.c.h.b16 %v138
    %v232 = vunpack.c.l.b16 %v139
    %v233 = vunpack.c.h.b16 %v139
    %v234 = vunpack.c.l.b16 %v140
    %v235 = vunpack.c.h.b16 %v140
    %v236 = vunpack.c.l.b16 %v141
    %v237 = vunpack.c.h.b16 %v141
    %v238 = vunpack.c.l.b16 %v142
    %v239 = vunpack.c.h.b16 %v142
    %v240 = vunpack.c.l.b16 %v143
    %v241 = vunpack.c.h.b16 %v143
    %v242 = vunpack.c.l.b16 %v144
    %v243 = vunpack.c.h.b16 %v144
    %v244 = vunpack.c.l.b16 %v145
    %v245 = vunpack.c.h.b16 %v145
    %v246 = vunpack.c.l.b16 %v146
    %v247 = vunpack.c.h.b16 %v146
    %v248 = vunpack.c.l.b16 %v147
    %v249 = vunpack.c.h.b16 %v147
    %v250 = vpack.c.b16 %v188, %v186
    %v251 = vpack.c.b16 %v189, %v187
    %v252 = vpack.c.b16 %v192, %v190
    %v253 = vpack.c.b16 %v193, %v191
    %v254 = vpack.c.b16 %v196, %v194
    %v255 = vpack.c.b16 %v197, %v195
    %v256 = vpack.c.b16 %v200, %v198
    %v257 = vpack.c.b16 %v201, %v199
    %v258 = vpack.c.b16 %v204, %v202
    %v259 = vpack.c.b16 %v205, %v203
    %v260 = vpack.c.b16 %v208, %v206
    %v261 = vpack.c.b16 %v209, %v207
    %v262 = vpack.c.b16 %v212, %v210
    %v263 = vpack.c.b16 %v213, %v211
    %v264 = vpack.c.b16 %v216, %v214
    %v265 = vpack.c.b16 %v217, %v215
    %v266 = vpack.c.b16 %v220, %v218
    %v267 = vpack.c.b16 %v221, %v219
    %v268 = vpack.c.b16 %v224, %v222
    %v269 = vpack.c.b16 %v225, %v223
    %v270 = vpack.c.b16 %v228, %v226
    %v271 = vpack.c.b16 %v229, %v227
    %v272 = vpack.c.b16 %v232, %v230
    %v273 = vpack.c.b16 %v233, %v231
    %v274 = vpack.c.b16 %v236, %v234
    %v275 = vpack.c.b16 %v237, %v235
    %v276 = vpack.c.b16 %v240, %v238
    %v277 = vpack.c.b16 %v241, %v239
    %v278 = vpack.c.b16 %v244, %v242
    %v279 = vpack.c.b16 %v245, %v243
    %v280 = vpack.c.b16 %v248, %v246
    %v281 = vpack.c.b16 %v249, %v247
    %314 = vmatpush.bf16.msra.mxu0 %v264
    %315 = vmatpush.bf16.msra.mxu0 %v262
    %316 = vmatpush.bf16.msra.mxu0 %v260
    %317 = vmatpush.bf16.msra.mxu0 %v258
    %318 = vmatpush.bf16.msra.mxu0 %v256
    %319 = vmatpush.bf16.msra.mxu0 %v254
    %320 = vmatpush.bf16.msra.mxu0 %v252
    %321 = vmatpush.bf16.msra.mxu0 %v250
    %322 = vmatmul.bf16.gmra.mxu0 %v114
    %v323 = vpop.f32.mrf.mxu0
    %v324 = vadd.f32 %v150, %v323
    %v325 = vpop.f32.mrf.mxu0
    %326 = vdwg.mxu0
    %327 = vmatpush.bf16.msra.mxu0 %v280
    %328 = vmatpush.bf16.msra.mxu0 %v278
    %329 = vmatpush.bf16.msra.mxu0 %v276
    %330 = vmatpush.bf16.msra.mxu0 %v274
    %331 = vmatpush.bf16.msra.mxu0 %v272
    %332 = vmatpush.bf16.msra.mxu0 %v270
    %333 = vmatpush.bf16.msra.mxu0 %v268
    %334 = vmatpush.bf16.msra.mxu0 %v266
    %335 = vmatmul.bf16.gmra.mxu0 %v115
    %v336 = vpop.f32.mrf.mxu0
    %v337 = vadd.f32 %v324, %v336
    %v338 = vpop.f32.mrf.mxu0
    %339 = vdwg.mxu0
    %340 = vmatpush.bf16.msra.mxu0 %v265
    %341 = vmatpush.bf16.msra.mxu0 %v263
    %342 = vmatpush.bf16.msra.mxu0 %v261
    %343 = vmatpush.bf16.msra.mxu0 %v259
    %344 = vmatpush.bf16.msra.mxu0 %v257
    %345 = vmatpush.bf16.msra.mxu0 %v255
    %346 = vmatpush.bf16.msra.mxu0 %v253
    %347 = vmatpush.bf16.msra.mxu0 %v251
    %348 = vmatmul.bf16.gmra.mxu0 %v114
    %v349 = vpop.f32.mrf.mxu0
    %v350 = vadd.f32 %v151, %v349
    %v351 = vpop.f32.mrf.mxu0
    %352 = vdwg.mxu0
    %353 = vmatpush.bf16.msra.mxu0 %v281
    %354 = vmatpush.bf16.msra.mxu0 %v279
    %355 = vmatpush.bf16.msra.mxu0 %v277
    %356 = vmatpush.bf16.msra.mxu0 %v275
    %357 = vmatpush.bf16.msra.mxu0 %v273
    %358 = vmatpush.bf16.msra.mxu0 %v271
    %359 = vmatpush.bf16.msra.mxu0 %v269
    %360 = vmatpush.bf16.msra.mxu0 %v267
    %361 = vmatmul.bf16.gmra.mxu0 %v115
    %v362 = vpop.f32.mrf.mxu0
    %v363 = vadd.f32 %v350, %v362
    %v364 = vpop.f32.mrf.mxu0
    %365 = vdwg.mxu0
    %v366 = vmax.f32 %v337, 0.0
    %v367 = vmax.f32 %v363, 0.0
    %v368 = vpack.c.bf16 %v366, %v366
    %v369 = vpack.c.bf16 %v367, %v367
    %v370 = vld [vmem:[%s8] sm:$0xf]
    %v371 = vld [vmem:[%s8 + $0x4] sm:$0xf]
    %v372 = vld [vmem:[%s8 + $0x8] sm:$0xf]
    %v373 = vld [vmem:[%s8 + $0xc] sm:$0xf]
    %v374 = vld [vmem:[%s8 + $0x10] sm:$0xf]
    %v375 = vld [vmem:[%s8 + $0x14] sm:$0xf]
    %v376 = vld [vmem:[%s8 + $0x18] sm:$0xf]
    %v377 = vld [vmem:[%s8 + $0x1c] sm:$0xf]
    %v378 = vld [vmem:[%s8 + $0x20] sm:$0xf]
    %v379 = vld [vmem:[%s8 + $0x24] sm:$0xf]
    %v380 = vld [vmem:[%s8 + $0x28] sm:$0xf]
    %v381 = vld [vmem:[%s8 + $0x2c] sm:$0xf]
    %v382 = vld [vmem:[%s8 + $0x30] sm:$0xf]
    %v383 = vld [vmem:[%s8 + $0x34] sm:$0xf]
    %v384 = vld [vmem:[%s8 + $0x38] sm:$0xf]
    %v385 = vld [vmem:[%s8 + $0x3c] sm:$0xf]
    %v386 = vld [vmem:[%s8 + $0x40] sm:$0xf]
    %v387 = vld [vmem:[%s8 + $0x44] sm:$0xf]
    %v388 = vld [vmem:[%s8 + $0x48] sm:$0xf]
    %v389 = vld [vmem:[%s8 + $0x4c] sm:$0xf]
    %v390 = vld [vmem:[%s8 + $0x50] sm:$0xf]
    %v391 = vld [vmem:[%s8 + $0x54] sm:$0xf]
    %v392 = vld [vmem:[%s8 + $0x58] sm:$0xf]
    %v393 = vld [vmem:[%s8 + $0x5c] sm:$0xf]
    %v394 = vld [vmem:[%s8 + $0x60] sm:$0xf]
    %v395 = vld [vmem:[%s8 + $0x64] sm:$0xf]
    %v396 = vld [vmem:[%s8 + $0x68] sm:$0xf]
    %v397 = vld [vmem:[%s8 + $0x6c] sm:$0xf]
    %v398 = vld [vmem:[%s8 + $0x70] sm:$0xf]
    %v399 = vld [vmem:[%s8 + $0x74] sm:$0xf]
    %v400 = vld [vmem:[%s8 + $0x78] sm:$0xf]
    %v401 = vld [vmem:[%s8 + $0x7c] sm:$0xf]
    %v402 = vld [vmem:[%s9] sm:$0x1]
    %v404 = vperm.slane %v402, 0
    %v438 = vunpack.c.l.b16 %v370
    %v439 = vunpack.c.l.b16 %v371
    %v440 = vunpack.c.l.b16 %v372
    %v441 = vunpack.c.l.b16 %v373
    %v442 = vunpack.c.l.b16 %v374
    %v443 = vunpack.c.l.b16 %v375
    %v444 = vunpack.c.l.b16 %v376
    %v445 = vunpack.c.l.b16 %v377
    %v446 = vunpack.c.l.b16 %v378
    %v447 = vunpack.c.l.b16 %v379
    %v448 = vunpack.c.l.b16 %v380
    %v449 = vunpack.c.l.b16 %v381
    %v450 = vunpack.c.l.b16 %v382
    %v451 = vunpack.c.l.b16 %v383
    %v452 = vunpack.c.l.b16 %v384
    %v453 = vunpack.c.l.b16 %v385
    %v454 = vunpack.c.l.b16 %v386
    %v455 = vunpack.c.l.b16 %v387
    %v456 = vunpack.c.l.b16 %v388
    %v457 = vunpack.c.l.b16 %v389
    %v458 = vunpack.c.l.b16 %v390
    %v459 = vunpack.c.l.b16 %v391
    %v460 = vunpack.c.l.b16 %v392
    %v461 = vunpack.c.l.b16 %v393
    %v462 = vunpack.c.l.b16 %v394
    %v463 = vunpack.c.l.b16 %v395
    %v464 = vunpack.c.l.b16 %v396
    %v465 = vunpack.c.l.b16 %v397
    %v466 = vunpack.c.l.b16 %v398
    %v467 = vunpack.c.l.b16 %v399
    %v468 = vunpack.c.l.b16 %v400
    %v469 = vunpack.c.l.b16 %v401
    %v470 = vpack.c.b16 %v439, %v438
    %v471 = vpack.c.b16 %v441, %v440
    %v472 = vpack.c.b16 %v443, %v442
    %v473 = vpack.c.b16 %v445, %v444
    %v474 = vpack.c.b16 %v447, %v446
    %v475 = vpack.c.b16 %v449, %v448
    %v476 = vpack.c.b16 %v451, %v450
    %v477 = vpack.c.b16 %v453, %v452
    %v478 = vpack.c.b16 %v455, %v454
    %v479 = vpack.c.b16 %v457, %v456
    %v480 = vpack.c.b16 %v459, %v458
    %v481 = vpack.c.b16 %v461, %v460
    %v482 = vpack.c.b16 %v463, %v462
    %v483 = vpack.c.b16 %v465, %v464
    %v484 = vpack.c.b16 %v467, %v466
    %v485 = vpack.c.b16 %v469, %v468
    %502 = vmatpush.bf16.msra.mxu0 %v477
    %503 = vmatpush.bf16.msra.mxu0 %v476
    %504 = vmatpush.bf16.msra.mxu0 %v475
    %505 = vmatpush.bf16.msra.mxu0 %v474
    %506 = vmatpush.bf16.msra.mxu0 %v473
    %507 = vmatpush.bf16.msra.mxu0 %v472
    %508 = vmatpush.bf16.msra.mxu0 %v471
    %509 = vmatpush.bf16.msra.mxu0 %v470
    %510 = vmatmul.bf16.gmra.mxu0 %v368
    %v511 = vpop.f32.mrf.mxu0
    %v512 = vadd.f32 %v404, %v511
    %v513 = vpop.f32.mrf.mxu0
    %514 = vdwg.mxu0
    %515 = vmatpush.bf16.msra.mxu0 %v485
    %516 = vmatpush.bf16.msra.mxu0 %v484
    %517 = vmatpush.bf16.msra.mxu0 %v483
    %518 = vmatpush.bf16.msra.mxu0 %v482
    %519 = vmatpush.bf16.msra.mxu0 %v481
    %520 = vmatpush.bf16.msra.mxu0 %v480
    %521 = vmatpush.bf16.msra.mxu0 %v479
    %522 = vmatpush.bf16.msra.mxu0 %v478
    %523 = vmatmul.bf16.gmra.mxu0 %v369
    %v524 = vpop.f32.mrf.mxu0
    %v525 = vadd.f32 %v512, %v524
    %v526 = vpop.f32.mrf.mxu0
    %527 = vdwg.mxu0
    %528 = vst.msk [vmem:[#allocation5] sm:$0xff] %vm96, %v525
    // Predicated region
    $region46: #{forwardmodel_forward.1} parent=1 // pred_check
      _
    $region47: #{forwardmodel_forward.1} parent=1 // pred_check_branch
      %530 = sbr.rel (0) target = $region49
    $region48: #{forwardmodel_forward.1} parent=1 // pred_region
      %532 = vsyncadd [#allocation4], 0
      %s534 = sshll.u32 [#allocation5], 4
      %s535 = int_to_ptr.vmem [resolvable:$true] %s534
      %s536 = sshll.u32 %s10, 4
      %s537 = int_to_ptr.hbm [resolvable:$true] %s536
      %539 = dma.vmem_to_hbm [thread:$0]  %s535, 128, %s537, [#allocation4]
    $region49: #{forwardmodel_forward.1} parent=1 // pred_fallthru
      _
    // Predicated region
    $region50: #{forwardmodel_forward.1} parent=1 // pred_check
      _
    $region51: #{forwardmodel_forward.1} parent=1 // pred_check_branch
      %541 = sbr.rel (0) target = $region53
    $region52: #{forwardmodel_forward.1} parent=1 // pred_region
      %543 = dma.done [#allocation4], 128
    $region53: #{forwardmodel_forward.1} parent=1 // pred_fallthru
      _
    %544 = vsyncpa [#allocation3], 1
    %545 = vsyncpa [#allocation4], 1

</llo_original>
